<compile_context>
chip_gen: v7x
topology: tpu7x:2x2x1
jax: 0.10.0
libtpu: 0.0.40
codegen_flags: <defaults>
</compile_context>

<pallas_src>
import math

import numpy as np
import jax
import jax.numpy as jnp
from jax import lax
from jax.experimental import pallas as pl
from jax.experimental.pallas import tpu as pltpu

NEG = -1.0e30      # stand-in for -inf that keeps exp/log NaN-free in f32
B_BLK = 32         # batch samples per grid step (4 independent sublane groups)
L_PAD = 128        # padded extended-label length (>= 2*S + 1), one lane row
TK_MAX = 128       # max time-chunk length per grid step along the T axis


def _make_ctc_kernel(tk):
    """Build the CTC forward kernel for a fixed time-chunk length `tk`."""

    def kernel(tn_max_ref,            # scalar prefetch: per-block max pred len
               lpext_ref, masks_ref,  # VMEM inputs
               out_ref,               # VMEM output
               alpha_ref):            # VMEM scratch (carried across T chunks)
        b = pl.program_id(0)
        tc = pl.program_id(1)
        n_tc = pl.num_programs(1)
        tn_max = tn_max_ref[b]        # max input length within this batch block
        t0 = tc * tk                  # global start timestep of this chunk

        B, L = alpha_ref.shape        # (B_BLK, L_PAD)
        lane = lax.broadcasted_iota(jnp.int32, (B, L), 1)

        # ---- init: alpha_0 restricted to the two admissible start states ----
        @pl.when(tc == 0)
        def _():
            alpha_ref[...] = lpext_ref[0] + masks_ref[0]      # lpext[0]+init_add

        # ---- alpha recursion over this T chunk (skip fully-dead chunks) -----
        @pl.when(t0 < tn_max)
        def _():
            # Loop-invariant additive masks, hoisted out of the recursion.
            m1_add = jnp.where(lane >= 1, 0.0, NEG).astype(jnp.float32)
            m2_add = masks_ref[1]                             # s-2 legal
            tn_f = masks_ref[3]                               # pred_len (f32)

            start = jnp.where(tc == 0, 1, 0)                  # t=0 consumed by init
            stop = jnp.minimum(tk, tn_max - t0)

            def body(l, alpha):
                rowt = lpext_ref[l]                           # (B_BLK, L_PAD)
                a1 = pltpu.roll(alpha, shift=1, axis=1) + m1_add
                a2 = pltpu.roll(alpha, shift=2, axis=1) + m2_add
                m = jnp.maximum(jnp.maximum(alpha, a1), a2)
                lse = m + jnp.log(jnp.exp(alpha - m) + jnp.exp(a1 - m)
                                  + jnp.exp(a2 - m))
                new_alpha = lse + rowt
                # Per-sample freeze once t passes that sample's input length.
                t_f = (t0 + l).astype(jnp.float32)
                return jnp.where(t_f < tn_f, new_alpha, alpha)

            alpha_ref[...] = lax.fori_loop(start, stop, body, alpha_ref[...])

        # ---- finalize: logsumexp over the two admissible terminal states ----
        @pl.when(tc == n_tc - 1)
        def _():
            z = alpha_ref[...] + masks_ref[2]                 # fin_add
            m_f = jnp.max(z, axis=-1, keepdims=True)
            lse_f = m_f + jnp.log(jnp.sum(jnp.exp(z - m_f), axis=-1,
                                          keepdims=True))
            # Lane-dense writeback: per-sample value broadcast across 128 lanes.
            out_ref[0] = jnp.broadcast_to(lse_f, (B, L))

    return kernel


def ocr_ctc_loss(logits_tnc, labels, prediction_sizes, target_sizes, eps):
    """logits_tnc: (T, N, C) log-probs; labels: (N, S) int padded targets."""
    T, N, C = logits_tnc.shape
    S = labels.shape[1]
    assert 2 * S + 1 <= L_PAD, "extended label length exceeds L_PAD=128"

    # ---- batch padding to a multiple of B_BLK -------------------------------
    n_pad_to = ((N + B_BLK - 1) // B_BLK) * B_BLK
    pad_n = n_pad_to - N
    num_blocks = n_pad_to // B_BLK

    # ---- time chunking ------------------------------------------------------
    tk = int(min(TK_MAX, max(T, 1)))
    t_pad_to = ((T + tk - 1) // tk) * tk
    pad_t = t_pad_to - T
    num_tc = t_pad_to // tk

    labels_i = labels.astype(jnp.int32)
    pred_sizes = jnp.minimum(prediction_sizes.astype(jnp.int32), T)
    targ_sizes = jnp.minimum(target_sizes.astype(jnp.int32), S)

    labels_p = jnp.pad(labels_i, ((0, pad_n), (0, 0)))
    pred_p = jnp.pad(pred_sizes, (0, pad_n))
    targ_p = jnp.pad(targ_sizes, (0, pad_n))
    logits_p = jnp.pad(logits_tnc.astype(jnp.float32),
                       ((0, pad_t), (0, pad_n), (0, 0)))      # (T_pad, Np, C)

    # Extended labels: blank(0) at even positions, labels at odd positions.
    ext_ids = jnp.zeros((n_pad_to, L_PAD), jnp.int32)
    ext_ids = ext_ids.at[:, 1 + 2 * jnp.arange(S)].set(labels_p)

    # Gather lp[t, ext[s]] in the wrapper (no one-hot, no transpose in-kernel).
    idx = jnp.broadcast_to(ext_ids[None, :, :], (t_pad_to, n_pad_to, L_PAD))
    lpext = jnp.take_along_axis(logits_p, idx, axis=2)        # (T_pad, Np, 128)

    lane = jnp.arange(L_PAD)[None, :]                          # (1, L_PAD)
    tlen = targ_p[:, None]                                     # (Np, 1)
    l_n = 2 * tlen + 1

    # Additive masks: 0 where the transition / state is legal, NEG otherwise.
    init_ok = (lane == 0) | ((lane == 1) & (tlen > 0))
    init_add = jnp.where(init_ok, 0.0, NEG)

    skip_ok = jnp.zeros((n_pad_to, L_PAD), bool)
    if S >= 2:
        diff = (labels_p[:, 1:] != labels_p[:, :-1]) & (labels_p[:, 1:] != 0)
        skip_ok = skip_ok.at[:, 3 + 2 * jnp.arange(S - 1)].set(diff)
    m2_add = jnp.where((lane >= 2) & skip_ok, 0.0, NEG)

    fin_ok = (lane == l_n - 1) | ((lane == l_n - 2) & (tlen > 0))
    fin_add = jnp.where(fin_ok, 0.0, NEG)

    # Per-sample input length, broadcast across lanes, stored as f32 (exact for
    # any realistic T) so everything rides in one stacked f32 side input.
    tn_f = jnp.broadcast_to(pred_p[:, None].astype(jnp.float32),
                            (n_pad_to, L_PAD))

    masks = jnp.stack([init_add, m2_add, fin_add, tn_f],
                      axis=0).astype(jnp.float32)             # (4, Np, L_PAD)

    tn_max_blk = jnp.max(pred_p.reshape(num_blocks, B_BLK), axis=1).astype(jnp.int32)

    kernel = _make_ctc_kernel(tk)

    grid_spec = pltpu.PrefetchScalarGridSpec(
        num_scalar_prefetch=1,
        grid=(num_blocks, num_tc),
        in_specs=[
            # lpext: streamed per T chunk.
            pl.BlockSpec((tk, B_BLK, L_PAD), lambda b, tc, tm: (tc, b, 0)),
            # masks: resident across the T axis (block index constant in tc).
            pl.BlockSpec((4, B_BLK, L_PAD), lambda b, tc, tm: (0, b, 0)),
        ],
        out_specs=pl.BlockSpec((1, B_BLK, L_PAD), lambda b, tc, tm: (b, 0, 0)),
        scratch_shapes=[pltpu.VMEM((B_BLK, L_PAD), jnp.float32)],   # alpha carry
    )

    # VMEM per step: lpext block tk*32*128*4 B (<= 2 MiB) double-buffered plus
    # a 64 KiB mask slab, a 16 KiB output tile and the alpha scratch — well
    # inside v5e's 16 MiB scoped default and v7x's 64 MiB physical VMEM.
    lse_out = pl.pallas_call(
        kernel,
        out_shape=jax.ShapeDtypeStruct((num_blocks, B_BLK, L_PAD), jnp.float32),
        grid_spec=grid_spec,
        compiler_params=pltpu.CompilerParams(
            dimension_semantics=("parallel", "arbitrary")),
    )(tn_max_blk, lpext, masks)

    # Per-sample log-likelihoods (lane 0 of each lane-dense row).
    lse = lse_out[:, :, 0].reshape(n_pad_to)[:N]

    # zero_infinity=True: impossible alignments (and empty inputs) give 0 loss.
    nll = jnp.where((lse < -1.0e29) | (pred_sizes <= 0), 0.0, -lse)
    # reduction='mean': divide by clamped target length, then batch mean.
    per_sample = nll / jnp.maximum(targ_sizes, 1).astype(jnp.float32)
    loss = jnp.mean(per_sample)

    # sanitize(): NaN -> 0.  (|loss - inf| < eps can never hold for a finite
    # float, matching the original module where that branch is dead code.)
    loss = jnp.where(jnp.isnan(loss), 0.0, loss)
    return loss


# ---------------- pure-numpy reference (same NEG arithmetic) ----------------
def _ctc_loss_ref(logits_tnc, labels, prediction_sizes, target_sizes):
    T, N, C = logits_tnc.shape
    losses = []
    for b in range(N):
        lp = np.asarray(logits_tnc[:, b, :], dtype=np.float64)
        lab = np.asarray(labels[b])
        T_n = int(prediction_sizes[b])
        U = int(target_sizes[b])
        ext = np.zeros(2 * U + 1, dtype=np.int64)
        ext[1::2] = lab[:U]
        alpha = np.full(2 * U + 1, NEG)
        alpha[0] = lp[0, 0]
        if U > 0:
            alpha[1] = lp[0, ext[1]]
        for t in range(1, T_n):
            new = np.full_like(alpha, NEG)
            for s in range(2 * U + 1):
                cands = [alpha[s]]
                if s >= 1:
                    cands.append(alpha[s - 1])
                if s >= 2 and ext[s] != 0 and ext[s] != ext[s - 2]:
                    cands.append(alpha[s - 2])
                m = max(cands)
                new[s] = m + math.log(sum(math.exp(c - m) for c in cands)) + lp[t, ext[s]]
            alpha = new
        cands = [alpha[2 * U]] + ([alpha[2 * U - 1]] if U > 0 else [])
        m = max(cands)
        lse = m + math.log(sum(math.exp(c - m) for c in cands))
        nll = 0.0 if lse < -1.0e29 else -lse
        losses.append(nll / max(U, 1))
    return float(np.mean(losses))


if __name__ == "__main__":
    key = jax.random.PRNGKey(0)
    k1, k2 = jax.random.split(key)

    # Small shapes: T=16 timesteps, N=2 batch, C=16 classes (blank=0), S=6 labels.
    T, N, C, S = 16, 2, 16, 6
    raw = jax.random.normal(k1, (T, N, C), dtype=jnp.float32)
    logits = jax.nn.log_softmax(raw, axis=-1)                 # (T, N, C) log-probs
    labels = jax.random.randint(k2, (N, S), 1, C).astype(jnp.int32)
    prediction_sizes = jnp.array([16, 14], dtype=jnp.int32)
    target_sizes = jnp.array([6, 5], dtype=jnp.int32)
    eps = 1e-6

    loss = ocr_ctc_loss(logits, labels, prediction_sizes, target_sizes, eps)
    loss = jax.block_until_ready(loss)

    # debug(): raise on NaN, mirroring the PyTorch module.
    if math.isnan(float(loss)):
        raise Exception("NaN loss obtained. But why?")

    ref = _ctc_loss_ref(np.asarray(logits), np.asarray(labels),
                        np.asarray(prediction_sizes), np.asarray(target_sizes))
    if not np.allclose(float(loss), ref, rtol=1e-3, atol=1e-3):
        raise AssertionError(f"kernel {float(loss)} vs reference {ref}")

    print("KERNEL_OK")
</pallas_src>

<mosaic_0001>
module attributes {stable_mosaic.version = 11 : i64} {
  func.func @kernel(%arg0: i32, %arg1: i32, %arg2: memref<1xi32, #tpu.memory_space<smem>>, %arg3: memref<16x32x128xf32, #tpu.memory_space<vmem>>, %arg4: memref<4x32x128xf32, #tpu.memory_space<vmem>>, %arg5: memref<1x32x128xf32, #tpu.memory_space<vmem>>, %arg6: memref<32x128xf32, #tpu.memory_space<vmem>>) attributes {dimension_semantics = [#tpu.dimension_semantics<parallel>, #tpu.dimension_semantics<arbitrary>], iteration_bounds = array<i64: 1, 1>, scalar_prefetch = 1 : i64, scratch_operands = 1 : i64, tpu.core_type = #tpu.core_type<tc>, window_params = [{transform_indices = @transform_0, window_bounds = array<i64: 16, 32, 128>}, {transform_indices = @transform_1, window_bounds = array<i64: 4, 32, 128>}, {transform_indices = @transform_2, window_bounds = array<i64: 1, 32, 128>}]} {
    %0 = arith.index_cast %arg0 : i32 to index
    %1 = memref.load %arg2[%0] : memref<1xi32, #tpu.memory_space<smem>>
    %c16_i32 = arith.constant 16 : i32
    %2 = arith.muli %arg1, %c16_i32 : i32
    %3 = tpu.iota {dimensions = array<i32: 1>} : vector<32x128xi32>
    %c0_i32 = arith.constant 0 : i32
    %4 = arith.cmpi eq, %arg1, %c0_i32 : i32
    %5 = arith.extui %4 : i1 to i32
    %c0_i32_0 = arith.constant 0 : i32
    %6 = arith.cmpi ne, %5, %c0_i32_0 : i32
    scf.if %6 {
      %c0 = arith.constant 0 : index
      %c0_4 = arith.constant 0 : index
      %c0_5 = arith.constant 0 : index
      %13 = vector.load %arg3[%c0, %c0_4, %c0_5] : memref<16x32x128xf32, #tpu.memory_space<vmem>>, vector<1x32x128xf32>
      %14 = vector.shape_cast %13 : vector<1x32x128xf32> to vector<32x128xf32>
      %c0_6 = arith.constant 0 : index
      %c0_7 = arith.constant 0 : index
      %c0_8 = arith.constant 0 : index
      %15 = vector.load %arg4[%c0_6, %c0_7, %c0_8] : memref<4x32x128xf32, #tpu.memory_space<vmem>>, vector<1x32x128xf32>
      %16 = vector.shape_cast %15 : vector<1x32x128xf32> to vector<32x128xf32>
      %17 = arith.addf %14, %16 : vector<32x128xf32>
      %c0_9 = arith.constant 0 : index
      %c0_10 = arith.constant 0 : index
      %18 = vector.load %arg6[%c0_9, %c0_10] : memref<32x128xf32, #tpu.memory_space<vmem>>, vector<32x128xf32>
      tpu.vector_store %arg6[%c0_9, %c0_10], %17 {strides = array<i32>} : memref<32x128xf32, #tpu.memory_space<vmem>>, vector<32x128xf32>,
    } else {
    }
    %7 = arith.cmpi slt, %2, %1 : i32
    %8 = arith.extui %7 : i1 to i32
    %c0_i32_1 = arith.constant 0 : i32
    %9 = arith.cmpi ne, %8, %c0_i32_1 : i32
    scf.if %9 {
      %c1_i32 = arith.constant 1 : i32
      %13 = vector.broadcast %c1_i32 : i32 to vector<32x128xi32>
      %14 = arith.cmpi sge, %3, %13 : vector<32x128xi32>
      %cst = arith.constant 0.000000e+00 : f32
      %cst_4 = arith.constant -1.000000e+30 : f32
      %15 = vector.broadcast %cst : f32 to vector<32x128xf32>
      %16 = vector.broadcast %cst_4 : f32 to vector<32x128xf32>
      %17 = arith.select %14, %15, %16 : vector<32x128xi1>, vector<32x128xf32>
      %c1 = arith.constant 1 : index
      %c0 = arith.constant 0 : index
      %c0_5 = arith.constant 0 : index
      %18 = vector.load %arg4[%c1, %c0, %c0_5] : memref<4x32x128xf32, #tpu.memory_space<vmem>>, vector<1x32x128xf32>
      %19 = vector.shape_cast %18 : vector<1x32x128xf32> to vector<32x128xf32>
      %c3 = arith.constant 3 : index
      %c0_6 = arith.constant 0 : index
      %c0_7 = arith.constant 0 : index
      %20 = vector.load %arg4[%c3, %c0_6, %c0_7] : memref<4x32x128xf32, #tpu.memory_space<vmem>>, vector<1x32x128xf32>
      %21 = vector.shape_cast %20 : vector<1x32x128xf32> to vector<32x128xf32>
      %c0_i32_8 = arith.constant 0 : i32
      %22 = arith.cmpi eq, %arg1, %c0_i32_8 : i32
      %c1_i32_9 = arith.constant 1 : i32
      %c0_i32_10 = arith.constant 0 : i32
      %23 = arith.select %22, %c1_i32_9, %c0_i32_10 : i32
      %24 = arith.subi %1, %2 : i32
      %c16_i32_11 = arith.constant 16 : i32
      %25 = arith.minsi %c16_i32_11, %24 : i32
      %c0_12 = arith.constant 0 : index
      %c0_13 = arith.constant 0 : index
      %26 = vector.load %arg6[%c0_12, %c0_13] : memref<32x128xf32, #tpu.memory_space<vmem>>, vector<32x128xf32>
      %27 = arith.subi %25, %23 : i32
      %28 = arith.addi %23, %27 : i32
      %c1_i32_14 = arith.constant 1 : i32
      %29 = scf.for %arg7 = %23 to %28 step %c1_i32_14 iter_args(%arg8 = %26) -> (vector<32x128xf32>)  : i32 {
        %31 = arith.index_cast %arg7 : i32 to index
        %c0_17 = arith.constant 0 : index
        %c0_18 = arith.constant 0 : index
        %32 = vector.load %arg3[%31, %c0_17, %c0_18] : memref<16x32x128xf32, #tpu.memory_space<vmem>>, vector<1x32x128xf32>
        %33 = vector.shape_cast %32 : vector<1x32x128xf32> to vector<32x128xf32>
        %c1_i32_19 = arith.constant 1 : i32
        %34 = tpu.dynamic_rotate %arg8 by %c1_i32_19 dim 1 : vector<32x128xf32>, i32 -> vector<32x128xf32>
        %35 = arith.addf %34, %17 : vector<32x128xf32>
        %c2_i32 = arith.constant 2 : i32
        %36 = tpu.dynamic_rotate %arg8 by %c2_i32 dim 1 : vector<32x128xf32>, i32 -> vector<32x128xf32>
        %37 = arith.addf %36, %19 : vector<32x128xf32>
        %38 = arith.maximumf %arg8, %35 : vector<32x128xf32>
        %39 = arith.maximumf %38, %37 : vector<32x128xf32>
        %40 = arith.subf %arg8, %39 : vector<32x128xf32>
        %41 = math.exp %40 : vector<32x128xf32>
        %42 = arith.subf %35, %39 : vector<32x128xf32>
        %43 = math.exp %42 : vector<32x128xf32>
        %44 = arith.addf %41, %43 : vector<32x128xf32>
        %45 = arith.subf %37, %39 : vector<32x128xf32>
        %46 = math.exp %45 : vector<32x128xf32>
        %47 = arith.addf %44, %46 : vector<32x128xf32>
        %48 = math.log %47 : vector<32x128xf32>
        %49 = arith.addf %39, %48 : vector<32x128xf32>
        %50 = arith.addf %49, %33 : vector<32x128xf32>
        %51 = arith.addi %2, %arg7 : i32
        %52 = arith.sitofp %51 : i32 to f32
        %53 = vector.broadcast %52 : f32 to vector<32x128xf32>
        %54 = arith.cmpf olt, %53, %21 : vector<32x128xf32>
        %55 = arith.select %54, %50, %arg8 : vector<32x128xi1>, vector<32x128xf32>
        scf.yield %55 : vector<32x128xf32>
      }
      %c0_15 = arith.constant 0 : index
      %c0_16 = arith.constant 0 : index
      %30 = vector.load %arg6[%c0_15, %c0_16] : memref<32x128xf32, #tpu.memory_space<vmem>>, vector<32x128xf32>
      tpu.vector_store %arg6[%c0_15, %c0_16], %29 {strides = array<i32>} : memref<32x128xf32, #tpu.memory_space<vmem>>, vector<32x128xf32>,
    } else {
    }
    %c0_i32_2 = arith.constant 0 : i32
    %10 = arith.cmpi eq, %arg1, %c0_i32_2 : i32
    %11 = arith.extui %10 : i1 to i32
    %c0_i32_3 = arith.constant 0 : i32
    %12 = arith.cmpi ne, %11, %c0_i32_3 : i32
    scf.if %12 {
      %c0 = arith.constant 0 : index
      %c0_4 = arith.constant 0 : index
      %13 = vector.load %arg6[%c0, %c0_4] : memref<32x128xf32, #tpu.memory_space<vmem>>, vector<32x128xf32>
      %c2 = arith.constant 2 : index
      %c0_5 = arith.constant 0 : index
      %c0_6 = arith.constant 0 : index
      %14 = vector.load %arg4[%c2, %c0_5, %c0_6] : memref<4x32x128xf32, #tpu.memory_space<vmem>>, vector<1x32x128xf32>
      %15 = vector.shape_cast %14 : vector<1x32x128xf32> to vector<32x128xf32>
      %16 = arith.addf %13, %15 : vector<32x128xf32>
      %cst = arith.constant dense<0xFF800000> : vector<32xf32>
      %17 = vector.multi_reduction <maximumf>, %16, %cst [1] : vector<32x128xf32> to vector<32xf32>
      %18 = vector.shape_cast %17 : vector<32xf32> to vector<32x1xf32>
      %19 = vector.broadcast %18 : vector<32x1xf32> to vector<32x128xf32>
      %20 = arith.subf %16, %19 : vector<32x128xf32>
      %21 = math.exp %20 : vector<32x128xf32>
      %cst_7 = arith.constant dense<0.000000e+00> : vector<32xf32>
      %22 = vector.multi_reduction <add>, %21, %cst_7 [1] : vector<32x128xf32> to vector<32xf32>
      %23 = vector.shape_cast %22 : vector<32xf32> to vector<32x1xf32>
      %24 = math.log %23 : vector<32x1xf32>
      %25 = arith.addf %18, %24 : vector<32x1xf32>
      %26 = vector.shape_cast %25 : vector<32x1xf32> to vector<32x1xf32>
      %27 = vector.broadcast %26 : vector<32x1xf32> to vector<32x128xf32>
      %c0_8 = arith.constant 0 : index
      %c0_9 = arith.constant 0 : index
      %c0_10 = arith.constant 0 : index
      %28 = vector.load %arg5[%c0_8, %c0_9, %c0_10] : memref<1x32x128xf32, #tpu.memory_space<vmem>>, vector<1x32x128xf32>
      %29 = vector.shape_cast %28 : vector<1x32x128xf32> to vector<32x128xf32>
      %30 = vector.shape_cast %27 : vector<32x128xf32> to vector<1x32x128xf32>
      tpu.vector_store %arg5[%c0_8, %c0_9, %c0_10], %30 {strides = array<i32>} : memref<1x32x128xf32, #tpu.memory_space<vmem>>, vector<1x32x128xf32>,
    } else {
    }
    return
  }
  func.func @transform_0(%arg0: i32, %arg1: i32, %arg2: memref<1xi32, #tpu.memory_space<smem>>) -> (i32, i32, i32) {
    %c0_i32 = arith.constant 0 : i32
    %c0_i32_0 = arith.constant 0 : i32
    return %arg1, %arg0, %c0_i32 : i32, i32, i32
  }
  func.func @transform_1(%arg0: i32, %arg1: i32, %arg2: memref<1xi32, #tpu.memory_space<smem>>) -> (i32, i32, i32) {
    %c0_i32 = arith.constant 0 : i32
    %c0_i32_0 = arith.constant 0 : i32
    %c0_i32_1 = arith.constant 0 : i32
    return %c0_i32, %arg0, %c0_i32_0 : i32, i32, i32
  }
  func.func @transform_2(%arg0: i32, %arg1: i32, %arg2: memref<1xi32, #tpu.memory_space<smem>>) -> (i32, i32, i32) {
    %c0_i32 = arith.constant 0 : i32
    %c0_i32_0 = arith.constant 0 : i32
    %c0_i32_1 = arith.constant 0 : i32
    return %arg0, %c0_i32, %c0_i32_0 : i32, i32, i32
  }
}

</mosaic_0001>

<llo_original>
// kernel: tpu_custom_call.1
$region0: #{tpu_custom_call.1}
  #allocation0 [shape = 'u32[]', space=smem, size = 0x4, offset = 0x4, fixed_abs, tag = 'smem constant byte address 0x4 - core index']
  #allocation1 [shape = 'u32[144,128]{1,0:T(1,128)}', space=vmem, size = 0x12000, scoped, tag = 'internal scratch']
  #allocation2 [shape = 'f32[32,128]{1,0:T(8,128)}', space=vmem, size = 0x4000, scoped, tag = 'scratch operand']
  #allocation3 [shape = 's32[1]{0}', space=sflag, size = 0x4, scoped, tag = 'scoped memory for tpu_custom_call.1']
  #allocation4 [shape = 's32[1]{0:T(128)S(6)}', space=smem, size = 0x200, scoped, tag = 'prefetched SMEM operand 0']
  %s0 = inlined_call_operand.<no memory space> [shape: s32[1], index: 0, kind: input, shape index: {}]
  %s1 = inlined_call_operand.hbm [shape: f32[16,32,128], index: 1, kind: input, shape index: {}]
  %s2 = inlined_call_operand.hbm [shape: f32[4,32,128], index: 2, kind: input, shape index: {}]
  %s3 = inlined_call_operand.hbm [shape: f32[1,32,128], index: 3, kind: output, shape index: {}]
  %s4 = sld [smem:[#allocation0]]
  $region45: #{tpu_custom_call.1} parent=0
    _
  %s6 = ssub.s32 1, %s4
  %s7 = scalar_select 0, %s6, %s4
  %8 = sst [smem:[#allocation4]] %s0
  $region1: #{tpu_custom_call.1} parent=0
    #allocation5 [shape = 'u8[262144]{0}', space=vmem, size = 0x40000, scoped, tag = 'input window, operand 1, single buffered']
    #allocation6 [shape = 's32[1]{0}', space=sflag, size = 0x4, scoped, tag = 'scoped memory for tpu_custom_call.1']
    #allocation7 [shape = 's32[1]{0}', space=sflag, size = 0x4, scoped, tag = 'scoped memory for tpu_custom_call.1']
    #allocation8 [shape = 'u8[65536]{0}', space=vmem, size = 0x10000, scoped, tag = 'input window, operand 2, single buffered']
    #allocation9 [shape = 's32[1]{0}', space=sflag, size = 0x4, scoped, tag = 'scoped memory for tpu_custom_call.1']
    #allocation10 [shape = 'u8[16384]{0}', space=vmem, size = 0x4000, scoped, tag = 'output window, operand 0, single buffered']
    %9 = vsyncpa [#allocation6], 0
    %10 = vsyncpa [#allocation9], 0
    %11 = vsyncpa [#allocation7], 0
    // Predicated region
    $region2: #{tpu_custom_call.1} parent=1 // pred_check
      _
    $region3: #{tpu_custom_call.1} parent=1 // pred_check_branch
      %13 = sbr.rel (0) target = $region5
    $region4: #{tpu_custom_call.1} parent=1 // pred_region
      %s15 = ssub.s32 8192, 8192
      %16 = vsyncadd [#allocation6], %s15
      %s17 = sshll.u32 [#allocation5], 4
      %s18 = int_to_ptr.vmem [resolvable:$true] %s17
      %23 = dma.hbm_to_vmem [thread:$0]  %s1, 8192, %s18, [#allocation6], 128, 128, 8
    $region5: #{tpu_custom_call.1} parent=1 // pred_fallthru
      _
    // Predicated region
    $region6: #{tpu_custom_call.1} parent=1 // pred_check
      _
    $region7: #{tpu_custom_call.1} parent=1 // pred_check_branch
      %25 = sbr.rel (0) target = $region9
    $region8: #{tpu_custom_call.1} parent=1 // pred_region
      %s27 = ssub.s32 2048, 2048
      %28 = vsyncadd [#allocation9], %s27
      %s29 = sshll.u32 [#allocation8], 4
      %s30 = int_to_ptr.vmem [resolvable:$true] %s29
      %35 = dma.hbm_to_vmem [thread:$0]  %s2, 2048, %s30, [#allocation9], 128, 128, 8
    $region9: #{tpu_custom_call.1} parent=1 // pred_fallthru
      _
    // Predicated region
    $region10: #{tpu_custom_call.1} parent=1 // pred_check
      _
    $region11: #{tpu_custom_call.1} parent=1 // pred_check_branch
      %37 = sbr.rel (0) target = $region13
    $region12: #{tpu_custom_call.1} parent=1 // pred_region
      %38 = dma.done [#allocation6], 8192
    $region13: #{tpu_custom_call.1} parent=1 // pred_fallthru
      _
    // Predicated region
    $region14: #{tpu_custom_call.1} parent=1 // pred_check
      _
    $region15: #{tpu_custom_call.1} parent=1 // pred_check_branch
      %40 = sbr.rel (0) target = $region17
    $region16: #{tpu_custom_call.1} parent=1 // pred_region
      %41 = dma.done [#allocation9], 2048
    $region17: #{tpu_custom_call.1} parent=1 // pred_fallthru
      _
    %s42 = sld [smem:[#allocation4]]
    %s43 = smul.u32 0, 16
    %v44 = vlaneseq
    %v45 = vand.u32 %v44, 127
    %p46 = scmp.eq.s32.totalorder 0, 0
    // Predicated region
    $region18: #{tpu_custom_call.1} parent=1 // pred_check
      %p47 = pneg %p46
    $region19: #{tpu_custom_call.1} parent=1 // pred_check_branch
      %49 = sbr.rel (%p47) target = $region21
    $region20: #{tpu_custom_call.1} parent=1 // pred_region
      %v50 = vld [vmem:[#allocation5] sm:$0xff]
      %v51 = vld [vmem:[#allocation5 + $0x8] sm:$0xff]
      %v52 = vld [vmem:[#allocation5 + $0x10] sm:$0xff]
      %v53 = vld [vmem:[#allocation5 + $0x18] sm:$0xff]
      %v54 = vld [vmem:[#allocation8] sm:$0xff]
      %v55 = vld [vmem:[#allocation8 + $0x8] sm:$0xff]
      %v56 = vld [vmem:[#allocation8 + $0x10] sm:$0xff]
      %v57 = vld [vmem:[#allocation8 + $0x18] sm:$0xff]
      %v58 = vadd.f32 %v50, %v54
      %v59 = vadd.f32 %v51, %v55
      %v60 = vadd.f32 %v52, %v56
      %v61 = vadd.f32 %v53, %v57
      %62 = vst [vmem:[#allocation2] sm:$0xff] %v58
      %63 = vst [vmem:[#allocation2 + $0x8] sm:$0xff] %v59
      %64 = vst [vmem:[#allocation2 + $0x10] sm:$0xff] %v60
      %65 = vst [vmem:[#allocation2 + $0x18] sm:$0xff] %v61
    $region21: #{tpu_custom_call.1} parent=1 // pred_fallthru
      _
    %p66 = scmp.lt.s32.totalorder %s43, %s42
    // Predicated region
    $region22: #{tpu_custom_call.1} parent=1 // pred_check
      %p67 = pneg %p66
    $region23: #{tpu_custom_call.1} parent=1 // pred_check_branch
      %69 = sbr.rel (%p67) target = $region25
    $region24: #{tpu_custom_call.1} parent=1 // pred_region
      %vm70 = vcmp.ge.s32.totalorder %v45, 1
      %v71 = vsel %vm70, 0.0, -1e+30
      %s72 = scalar_lea.vmem [#allocation8], 32
      %v73 = vld [vmem:[%s72] sm:$0xff]
      %v74 = vld [vmem:[%s72 + $0x8] sm:$0xff]
      %v75 = vld [vmem:[%s72 + $0x10] sm:$0xff]
      %v76 = vld [vmem:[%s72 + $0x18] sm:$0xff]
      %s77 = scalar_lea.vmem [#allocation8], 96
      %v78 = vld [vmem:[%s77] sm:$0xff]
      %v79 = vld [vmem:[%s77 + $0x8] sm:$0xff]
      %v80 = vld [vmem:[%s77 + $0x10] sm:$0xff]
      %v81 = vld [vmem:[%s77 + $0x18] sm:$0xff]
      %s82 = scalar_select %p46, 1, 0
      %s83 = ssub.s32 %s42, %s43
      %p84 = scmp.lt.s32.totalorder %s83, 16
      %s85 = scalar_select %p84, %s83, 16
      %v86 = vld [vmem:[#allocation2] sm:$0xff]
      %v87 = vld [vmem:[#allocation2 + $0x8] sm:$0xff]
      %v88 = vld [vmem:[#allocation2 + $0x10] sm:$0xff]
      %v89 = vld [vmem:[#allocation2 + $0x18] sm:$0xff]
      // While loop
      $region26: #{tpu_custom_call.1} parent=24 // loop_pre_header
        _
      $region27: #{tpu_custom_call.1} parent=24 // loop_header
        %s91 = sphi %s82, %s93
        %p92 = scmp.ge.s32.totalorder %s91, %s85
        %v96 = vphi %v86, %v205
        %v97 = vphi %v87, %v206
        %v98 = vphi %v88, %v207
        %v99 = vphi %v89, %v208
      $region28: #{tpu_custom_call.1} parent=24 // loop_header_branch
        %95 = sbr.rel (%p92) target = $region32
      $region29: #{tpu_custom_call.1} parent=24 // loop_body
        %s100 = smul.u32 %s91, 32
        %s101 = scalar_lea.vmem [#allocation5], %s100
        %v102 = vld [vmem:[%s101] sm:$0xff]
        %v103 = vld [vmem:[%s101 + $0x8] sm:$0xff]
        %v104 = vld [vmem:[%s101 + $0x10] sm:$0xff]
        %v105 = vld [vmem:[%s101 + $0x18] sm:$0xff]
        %106 = vrot.lane.b32.xlu0 %v96, 1
        %v107 = vpop.permute.xlu0 %106
        %108 = vrot.lane.b32.xlu0 %v97, 1
        %v109 = vpop.permute.xlu0 %108
        %110 = vrot.lane.b32.xlu0 %v98, 1
        %v111 = vpop.permute.xlu0 %110
        %112 = vrot.lane.b32.xlu0 %v99, 1
        %v113 = vpop.permute.xlu0 %112
        %v114 = vadd.f32 %v107, %v71
        %v115 = vadd.f32 %v109, %v71
        %v116 = vadd.f32 %v111, %v71
        %v117 = vadd.f32 %v113, %v71
        %118 = vrot.lane.b32.xlu0 %v96, 2
        %v119 = vpop.permute.xlu0 %118
        %120 = vrot.lane.b32.xlu0 %v97, 2
        %v121 = vpop.permute.xlu0 %120
        %122 = vrot.lane.b32.xlu0 %v98, 2
        %v123 = vpop.permute.xlu0 %122
        %124 = vrot.lane.b32.xlu0 %v99, 2
        %v125 = vpop.permute.xlu0 %124
        %v126 = vadd.f32 %v119, %v73
        %v127 = vadd.f32 %v121, %v74
        %v128 = vadd.f32 %v123, %v75
        %v129 = vadd.f32 %v125, %v76
        %v130 = vmax.f32 %v96, %v114
        %v131 = vmax.f32 %v97, %v115
        %v132 = vmax.f32 %v98, %v116
        %v133 = vmax.f32 %v99, %v117
        %v134 = vmax.f32 %v130, %v126
        %v135 = vmax.f32 %v131, %v127
        %v136 = vmax.f32 %v132, %v128
        %v137 = vmax.f32 %v133, %v129
        %v138 = vsub.f32 %v96, %v134
        %v139 = vsub.f32 %v97, %v135
        %v140 = vsub.f32 %v98, %v136
        %v141 = vsub.f32 %v99, %v137
        %v142 = vmul.f32 %v138, 1.442695
        %v143 = vpow.pop %v142
        %v144 = vmul.f32 %v139, 1.442695
        %v145 = vpow.pop %v144
        %v146 = vmul.f32 %v140, 1.442695
        %v147 = vpow.pop %v146
        %v148 = vmul.f32 %v141, 1.442695
        %v149 = vpow.pop %v148
        %v150 = vsub.f32 %v114, %v134
        %v151 = vsub.f32 %v115, %v135
        %v152 = vsub.f32 %v116, %v136
        %v153 = vsub.f32 %v117, %v137
        %v154 = vmul.f32 %v150, 1.442695
        %v155 = vpow.pop %v154
        %v156 = vmul.f32 %v151, 1.442695
        %v157 = vpow.pop %v156
        %v158 = vmul.f32 %v152, 1.442695
        %v159 = vpow.pop %v158
        %v160 = vmul.f32 %v153, 1.442695
        %v161 = vpow.pop %v160
        %v162 = vadd.f32 %v143, %v155
        %v163 = vadd.f32 %v145, %v157
        %v164 = vadd.f32 %v147, %v159
        %v165 = vadd.f32 %v149, %v161
        %v166 = vsub.f32 %v126, %v134
        %v167 = vsub.f32 %v127, %v135
        %v168 = vsub.f32 %v128, %v136
        %v169 = vsub.f32 %v129, %v137
        %v170 = vmul.f32 %v166, 1.442695
        %v171 = vpow.pop %v170
        %v172 = vmul.f32 %v167, 1.442695
        %v173 = vpow.pop %v172
        %v174 = vmul.f32 %v168, 1.442695
        %v175 = vpow.pop %v174
        %v176 = vmul.f32 %v169, 1.442695
        %v177 = vpow.pop %v176
        %v178 = vadd.f32 %v162, %v171
        %v179 = vadd.f32 %v163, %v173
        %v180 = vadd.f32 %v164, %v175
        %v181 = vadd.f32 %v165, %v177
        %v182 = vlog2.pop %v178
        %v183 = vmul.f32 %v182, 0.6931472
        %v184 = vlog2.pop %v179
        %v185 = vmul.f32 %v184, 0.6931472
        %v186 = vlog2.pop %v180
        %v187 = vmul.f32 %v186, 0.6931472
        %v188 = vlog2.pop %v181
        %v189 = vmul.f32 %v188, 0.6931472
        %v190 = vadd.f32 %v134, %v183
        %v191 = vadd.f32 %v135, %v185
        %v192 = vadd.f32 %v136, %v187
        %v193 = vadd.f32 %v137, %v189
        %v194 = vadd.f32 %v190, %v102
        %v195 = vadd.f32 %v191, %v103
        %v196 = vadd.f32 %v192, %v104
        %v197 = vadd.f32 %v193, %v105
        %s198 = sadd.s32 %s43, %s91
        %s199 = scvt.s32.f32 %s198
        %v200 = vstv %s199
        %vm201 = vcmp.lt.f32.partialorder %v200, %v78
        %vm202 = vcmp.lt.f32.partialorder %v200, %v79
        %vm203 = vcmp.lt.f32.partialorder %v200, %v80
        %vm204 = vcmp.lt.f32.partialorder %v200, %v81
        %v205 = vsel %vm201, %v194, %v96
        %v206 = vsel %vm202, %v195, %v97
        %v207 = vsel %vm203, %v196, %v98
        %v208 = vsel %vm204, %v197, %v99
      $region30: #{tpu_custom_call.1} parent=24 // loop_footer
        %s93 = sadd.s32 %s91, 1
      $region31: #{tpu_custom_call.1} parent=24 // loop_footer_branch
        %90 = sbr.rel target = $region27
      $region32: #{tpu_custom_call.1} parent=24 // loop_exit
        _
      %209 = vst [vmem:[#allocation2] sm:$0xff] %v96
      %210 = vst [vmem:[#allocation2 + $0x8] sm:$0xff] %v97
      %211 = vst [vmem:[#allocation2 + $0x10] sm:$0xff] %v98
      %212 = vst [vmem:[#allocation2 + $0x18] sm:$0xff] %v99
    $region25: #{tpu_custom_call.1} parent=1 // pred_fallthru
      _
    // Predicated region
    $region33: #{tpu_custom_call.1} parent=1 // pred_check
      %p213 = pneg %p46
    $region34: #{tpu_custom_call.1} parent=1 // pred_check_branch
      %215 = sbr.rel (%p213) target = $region36
    $region35: #{tpu_custom_call.1} parent=1 // pred_region
      %v216 = vld [vmem:[#allocation2] sm:$0xff]
      %v217 = vld [vmem:[#allocation2 + $0x8] sm:$0xff]
      %v218 = vld [vmem:[#allocation2 + $0x10] sm:$0xff]
      %v219 = vld [vmem:[#allocation2 + $0x18] sm:$0xff]
      %s220 = scalar_lea.vmem [#allocation8], 64
      %v221 = vld [vmem:[%s220] sm:$0xff]
      %v222 = vld [vmem:[%s220 + $0x8] sm:$0xff]
      %v223 = vld [vmem:[%s220 + $0x10] sm:$0xff]
      %v224 = vld [vmem:[%s220 + $0x18] sm:$0xff]
      %v225 = vadd.f32 %v216, %v221
      %v226 = vadd.f32 %v217, %v222
      %v227 = vadd.f32 %v218, %v223
      %v228 = vadd.f32 %v219, %v224
      %229 = vmax.xlane.f32.xlu0 %v225
      %v230 = vpop.xlane.xlu0 %229
      %231 = vmax.xlane.f32.xlu0 %v226
      %v232 = vpop.xlane.xlu0 %231
      %233 = vmax.xlane.f32.xlu0 %v227
      %v234 = vpop.xlane.xlu0 %233
      %235 = vmax.xlane.f32.xlu0 %v228
      %v236 = vpop.xlane.xlu0 %235
      %v237 = vsub.f32 %v225, %v230
      %v238 = vsub.f32 %v226, %v232
      %v239 = vsub.f32 %v227, %v234
      %v240 = vsub.f32 %v228, %v236
      %v241 = vmul.f32 %v237, 1.442695
      %v242 = vpow.pop %v241
      %v243 = vmul.f32 %v238, 1.442695
      %v244 = vpow.pop %v243
      %v245 = vmul.f32 %v239, 1.442695
      %v246 = vpow.pop %v245
      %v247 = vmul.f32 %v240, 1.442695
      %v248 = vpow.pop %v247
      %249 = vadd.xlane.f32.xlu0 %v242
      %v250 = vpop.xlane.xlu0 %249
      %251 = vadd.xlane.f32.xlu0 %v244
      %v252 = vpop.xlane.xlu0 %251
      %253 = vadd.xlane.f32.xlu0 %v246
      %v254 = vpop.xlane.xlu0 %253
      %255 = vadd.xlane.f32.xlu0 %v248
      %v256 = vpop.xlane.xlu0 %255
      %v257 = vlog2.pop %v250
      %v258 = vmul.f32 %v257, 0.6931472
      %v259 = vlog2.pop %v252
      %v260 = vmul.f32 %v259, 0.6931472
      %v261 = vlog2.pop %v254
      %v262 = vmul.f32 %v261, 0.6931472
      %v263 = vlog2.pop %v256
      %v264 = vmul.f32 %v263, 0.6931472
      %v265 = vadd.f32 %v230, %v258
      %v266 = vadd.f32 %v232, %v260
      %v267 = vadd.f32 %v234, %v262
      %v268 = vadd.f32 %v236, %v264
      %269 = vst [vmem:[#allocation10] sm:$0xff] %v265
      %270 = vst [vmem:[#allocation10 + $0x8] sm:$0xff] %v266
      %271 = vst [vmem:[#allocation10 + $0x10] sm:$0xff] %v267
      %272 = vst [vmem:[#allocation10 + $0x18] sm:$0xff] %v268
    $region36: #{tpu_custom_call.1} parent=1 // pred_fallthru
      _
    // Predicated region
    $region37: #{tpu_custom_call.1} parent=1 // pred_check
      _
    $region38: #{tpu_custom_call.1} parent=1 // pred_check_branch
      %274 = sbr.rel (0) target = $region40
    $region39: #{tpu_custom_call.1} parent=1 // pred_region
      %s276 = ssub.s32 512, 512
      %277 = vsyncadd [#allocation7], %s276
      %s278 = sshll.u32 [#allocation10], 4
      %s279 = int_to_ptr.vmem [resolvable:$true] %s278
      %284 = dma.vmem_to_hbm [thread:$0]  %s279, 512, %s3, [#allocation7], 128, 128, 8
    $region40: #{tpu_custom_call.1} parent=1 // pred_fallthru
      _
    // Predicated region
    $region41: #{tpu_custom_call.1} parent=1 // pred_check
      _
    $region42: #{tpu_custom_call.1} parent=1 // pred_check_branch
      %286 = sbr.rel (0) target = $region44
    $region43: #{tpu_custom_call.1} parent=1 // pred_region
      %287 = dma.done [#allocation7], 512
    $region44: #{tpu_custom_call.1} parent=1 // pred_fallthru
      _
    %288 = vsyncpa [#allocation6], 1
    %289 = vsyncpa [#allocation9], 1
    %290 = vsyncpa [#allocation7], 1

</llo_original>
